<compile_context>
chip_gen: v6e
topology: v6e:2x2x1
jax: 0.10.0
libtpu: 0.0.40
codegen_flags: <defaults>
</compile_context>

<pallas_src>
import functools

import jax
import jax.numpy as jnp
from jax.experimental import pallas as pl
from jax.experimental.pallas import tpu as pltpu


_LANES = 128


def _dice_sums_kernel(x_ref, t_ref, o_ref, acc_ref, *,
                      steps_per_core, tile_rows, valid_rows, need_mask):
    """Accumulate per-lane partial sums of (x*t) and (x+t) over row tiles.

    Grid: (P, steps_per_core).  Axis 0 is "parallel" (one partition per
    TensorCore on v7x), axis 1 is the "arbitrary" reduction axis.

    acc_ref : (2, 128) f32 VMEM scratch.  Row 0 = per-lane sum(x*t),
              row 1 = per-lane sum(x + t).
    o_ref   : (1, 2, 128) block of the per-partition partial-sum output,
              written once on the last reduction step.
    """
    p = pl.program_id(0)
    k = pl.program_id(1)

    @pl.when(k == 0)
    def _init():
        acc_ref[...] = jnp.zeros_like(acc_ref)

    # Inputs stream in their native dtype; up-cast rides a free VPU slot
    # under the DMA on all generations.
    x = x_ref[...].astype(jnp.float32)
    t = t_ref[...].astype(jnp.float32)

    if need_mask:
        # Zero rows past the end of the (possibly ragged) input.  This also
        # covers whole tiles past the end: their index_map block index is
        # clamped in-range (so the DMA is in-bounds) and fully masked here.
        tile_idx = p * steps_per_core + k
        row = jax.lax.broadcasted_iota(jnp.int32, x.shape, 0)
        valid = (tile_idx * tile_rows + row) < valid_rows
        x = jnp.where(valid, x, 0.0)
        t = jnp.where(valid, t, 0.0)

    # Two reduction trees per step (x*t and x+t), one (2, 128) accumulator RMW.
    partial = jnp.concatenate(
        [jnp.sum(x * t, axis=0, keepdims=True),     # (1, 128)
         jnp.sum(x + t, axis=0, keepdims=True)],    # (1, 128)
        axis=0)                                     # (2, 128)
    acc_ref[...] += partial

    @pl.when(k == pl.num_programs(1) - 1)
    def _finalize():
        o_ref[0] = acc_ref[...]


def dice_loss(inputs, targets, smooth=1.0, *, tile_rows=None, num_partitions=2):
    """Pallas forward for DiceLoss.forward(inputs, targets) -> scalar loss."""
    assert inputs.shape == targets.shape, (inputs.shape, targets.shape)
    smooth = float(smooth)

    # Flatten (metadata-only reshape), keep native dtypes.
    x = inputs.reshape(-1)
    t = targets.reshape(-1)
    size = x.shape[0]

    # Lane-dense (rows, 128) view.  Pad only up to the next multiple of 128
    # (zeros are neutral for all sums); partial last *tiles* are masked
    # in-kernel, so no padding to tile multiples.
    rows = pl.cdiv(size, _LANES)
    pad = rows * _LANES - size
    if pad:
        # TODO(synk): a fully pad-free ragged tail (size % 128 != 0) would need
        # a manual-DMA (memory_space=pl.ANY) path; we accept one small pad here.
        x = jnp.pad(x, (0, pad))
        t = jnp.pad(t, (0, pad))
    x2 = x.reshape(rows, _LANES)
    t2 = t.reshape(rows, _LANES)

    # Tile sizing: ~2 MiB per input per pipeline buffer (HBM-roofline plateau),
    # i.e. 4096 rows f32 / 8192 rows bf16 / 16384 rows int8; aligned to 32 rows
    # which covers the 8/16/32 sublane packing of every dtype.
    itemsize = max(x2.dtype.itemsize, t2.dtype.itemsize)
    if tile_rows is None:
        tile_rows = (2 * 1024 * 1024) // (_LANES * itemsize)
    tile_rows = max(32, (int(tile_rows) + 31) // 32 * 32)
    tm = min(tile_rows, rows)                 # full-dim block for tiny inputs

    total_tiles = pl.cdiv(rows, tm)
    num_p = max(1, min(int(num_partitions), total_tiles))
    spc = pl.cdiv(total_tiles, num_p)         # reduction steps per partition
    covered_rows = num_p * spc * tm
    need_mask = covered_rows != rows
    need_clamp = num_p * spc > total_tiles

    if need_clamp:
        def in_map(p, k):
            return (jnp.minimum(p * spc + k, total_tiles - 1), 0)
    else:
        def in_map(p, k):
            return (p * spc + k, 0)

    kernel = functools.partial(
        _dice_sums_kernel,
        steps_per_core=spc, tile_rows=tm, valid_rows=rows, need_mask=need_mask)

    cost = pl.CostEstimate(
        flops=4 * size,
        transcendentals=0,
        bytes_accessed=size * (x2.dtype.itemsize + t2.dtype.itemsize)
        + num_p * 2 * _LANES * 4)

    partials = pl.pallas_call(
        kernel,
        out_shape=jax.ShapeDtypeStruct((num_p, 2, _LANES), jnp.float32),
        grid_spec=pltpu.PrefetchScalarGridSpec(
            num_scalar_prefetch=0,
            grid=(num_p, spc),
            in_specs=[
                pl.BlockSpec((tm, _LANES), in_map),
                pl.BlockSpec((tm, _LANES), in_map),
            ],
            out_specs=pl.BlockSpec((1, 2, _LANES), lambda p, k: (p, 0, 0)),
            scratch_shapes=[pltpu.VMEM((2, _LANES), jnp.float32)],
        ),
        compiler_params=pltpu.CompilerParams(
            dimension_semantics=("parallel", "arbitrary"),
            vmem_limit_bytes=32 * 1024 * 1024,
        ),
        cost_estimate=cost,
    )(x2, t2)

    # Tiny scalar epilogue in XLA (lets the kernel's grid shard across both
    # v7x TensorCores, each emitting its own partial-sum block).
    inter = jnp.sum(partials[:, 0, :])
    total = jnp.sum(partials[:, 1, :])        # sum(x) + sum(t)
    dice = (2.0 * inter + smooth) / (total + smooth)
    return -jnp.log(dice)


def _reference(inputs, targets, smooth=1.0):
    """Pure-JAX reference matching the torch DiceLoss semantics."""
    inter = jnp.sum(inputs * targets)
    dice = (2.0 * inter + smooth) / (jnp.sum(inputs) + jnp.sum(targets) + smooth)
    return -jnp.log(dice)


if __name__ == "__main__":
    key = jax.random.PRNGKey(0)
    k_in, k_tg, k_in2, k_tg2 = jax.random.split(key, 4)

    # Primary check: batch=2, channels=4, 16x16 spatial, float32.
    N, C, H, W = 2, 4, 16, 16
    inputs = jax.nn.sigmoid(jax.random.normal(k_in, (N, C, H, W), jnp.float32))
    targets = (jax.random.uniform(k_tg, (N, C, H, W)) > 0.5).astype(jnp.float32)

    out = jax.block_until_ready(dice_loss(inputs, targets, smooth=1.0))
    ref = _reference(inputs, targets, 1.0)
    assert out.shape == ()
    assert jnp.allclose(out, ref, atol=1e-5, rtol=1e-5), (out, ref)

    # Ragged path: size not a multiple of 128, tiles not a multiple of the
    # partition count (exercises the in-kernel mask and the clamped index_map).
    x_r = jax.nn.sigmoid(jax.random.normal(k_in2, (12000,), jnp.float32))
    t_r = (jax.random.uniform(k_tg2, (12000,)) > 0.5).astype(jnp.float32)
    out_r = jax.block_until_ready(
        dice_loss(x_r, t_r, smooth=1.0, tile_rows=32, num_partitions=2))
    ref_r = _reference(x_r, t_r, 1.0)
    assert jnp.allclose(out_r, ref_r, atol=1e-5, rtol=1e-5), (out_r, ref_r)

    # Native-dtype streaming: bf16 in HBM, f32 accumulation in-kernel.
    out_bf = jax.block_until_ready(
        dice_loss(inputs.astype(jnp.bfloat16), targets.astype(jnp.bfloat16)))
    ref_bf = _reference(inputs.astype(jnp.bfloat16).astype(jnp.float32),
                        targets.astype(jnp.bfloat16).astype(jnp.float32), 1.0)
    assert jnp.allclose(out_bf, ref_bf, atol=1e-4, rtol=1e-4), (out_bf, ref_bf)

    print("KERNEL_OK")
</pallas_src>

<mosaic_0001>
module attributes {stable_mosaic.version = 11 : i64} {
  func.func @_dice_sums_kernel(%arg0: i32, %arg1: i32, %arg2: memref<16x128xf32, #tpu.memory_space<vmem>>, %arg3: memref<16x128xf32, #tpu.memory_space<vmem>>, %arg4: memref<1x2x128xf32, #tpu.memory_space<vmem>>, %arg5: memref<2x128xf32, #tpu.memory_space<vmem>>) attributes {dimension_semantics = [#tpu.dimension_semantics<parallel>, #tpu.dimension_semantics<arbitrary>], iteration_bounds = array<i64: 1, 1>, scalar_prefetch = 0 : i64, scratch_operands = 1 : i64, tpu.core_type = #tpu.core_type<tc>, window_params = [{transform_indices = @transform_0, window_bounds = array<i64: 16, 128>}, {transform_indices = @transform_1, window_bounds = array<i64: 16, 128>}, {transform_indices = @transform_2, window_bounds = array<i64: 1, 2, 128>}]} {
    %c0_i32 = arith.constant 0 : i32
    %0 = arith.cmpi eq, %arg1, %c0_i32 : i32
    %1 = arith.extui %0 : i1 to i32
    %c0_i32_0 = arith.constant 0 : i32
    %2 = arith.cmpi ne, %1, %c0_i32_0 : i32
    scf.if %2 {
      %cst_11 = arith.constant 0.000000e+00 : f32
      %18 = vector.broadcast %cst_11 : f32 to vector<2x128xf32>
      %c0_12 = arith.constant 0 : index
      %c0_13 = arith.constant 0 : index
      %19 = vector.load %arg5[%c0_12, %c0_13] : memref<2x128xf32, #tpu.memory_space<vmem>>, vector<2x128xf32>
      tpu.vector_store %arg5[%c0_12, %c0_13], %18 {strides = array<i32>} : memref<2x128xf32, #tpu.memory_space<vmem>>, vector<2x128xf32>,
    } else {
    }
    %c0 = arith.constant 0 : index
    %c0_1 = arith.constant 0 : index
    %3 = vector.load %arg2[%c0, %c0_1] : memref<16x128xf32, #tpu.memory_space<vmem>>, vector<16x128xf32>
    %c0_2 = arith.constant 0 : index
    %c0_3 = arith.constant 0 : index
    %4 = vector.load %arg3[%c0_2, %c0_3] : memref<16x128xf32, #tpu.memory_space<vmem>>, vector<16x128xf32>
    %5 = arith.mulf %3, %4 : vector<16x128xf32>
    %cst = arith.constant dense<0.000000e+00> : vector<128xf32>
    %6 = vector.multi_reduction <add>, %5, %cst [0] : vector<16x128xf32> to vector<128xf32>
    %7 = vector.shape_cast %6 : vector<128xf32> to vector<1x128xf32>
    %8 = arith.addf %3, %4 : vector<16x128xf32>
    %cst_4 = arith.constant dense<0.000000e+00> : vector<128xf32>
    %9 = vector.multi_reduction <add>, %8, %cst_4 [0] : vector<16x128xf32> to vector<128xf32>
    %10 = vector.shape_cast %9 : vector<128xf32> to vector<1x128xf32>
    %11 = tpu.concatenate %7, %10 in 0 : vector<1x128xf32>, vector<1x128xf32> -> vector<2x128xf32>
    %c0_5 = arith.constant 0 : index
    %c0_6 = arith.constant 0 : index
    %12 = vector.load %arg5[%c0_5, %c0_6] : memref<2x128xf32, #tpu.memory_space<vmem>>, vector<2x128xf32>
    %13 = arith.addf %12, %11 : vector<2x128xf32>
    %c0_7 = arith.constant 0 : index
    %c0_8 = arith.constant 0 : index
    %14 = vector.load %arg5[%c0_7, %c0_8] : memref<2x128xf32, #tpu.memory_space<vmem>>, vector<2x128xf32>
    tpu.vector_store %arg5[%c0_7, %c0_8], %13 {strides = array<i32>} : memref<2x128xf32, #tpu.memory_space<vmem>>, vector<2x128xf32>,
    %c0_i32_9 = arith.constant 0 : i32
    %15 = arith.cmpi eq, %arg1, %c0_i32_9 : i32
    %16 = arith.extui %15 : i1 to i32
    %c0_i32_10 = arith.constant 0 : i32
    %17 = arith.cmpi ne, %16, %c0_i32_10 : i32
    scf.if %17 {
      %c0_11 = arith.constant 0 : index
      %c0_12 = arith.constant 0 : index
      %18 = vector.load %arg5[%c0_11, %c0_12] : memref<2x128xf32, #tpu.memory_space<vmem>>, vector<2x128xf32>
      %c0_13 = arith.constant 0 : index
      %c0_14 = arith.constant 0 : index
      %c0_15 = arith.constant 0 : index
      %19 = vector.load %arg4[%c0_13, %c0_14, %c0_15] : memref<1x2x128xf32, #tpu.memory_space<vmem>>, vector<1x2x128xf32>
      %20 = vector.shape_cast %19 : vector<1x2x128xf32> to vector<2x128xf32>
      %21 = vector.shape_cast %18 : vector<2x128xf32> to vector<1x2x128xf32>
      tpu.vector_store %arg4[%c0_13, %c0_14, %c0_15], %21 {strides = array<i32>} : memref<1x2x128xf32, #tpu.memory_space<vmem>>, vector<1x2x128xf32>,
    } else {
    }
    return
  }
  func.func @transform_0(%arg0: i32, %arg1: i32) -> (i32, i32) {
    %c1_i32 = arith.constant 1 : i32
    %0 = arith.muli %arg0, %c1_i32 : i32
    %1 = arith.addi %0, %arg1 : i32
    %c0_i32 = arith.constant 0 : i32
    %c0_i32_0 = arith.constant 0 : i32
    return %1, %c0_i32 : i32, i32
  }
  func.func @transform_1(%arg0: i32, %arg1: i32) -> (i32, i32) {
    %c1_i32 = arith.constant 1 : i32
    %0 = arith.muli %arg0, %c1_i32 : i32
    %1 = arith.addi %0, %arg1 : i32
    %c0_i32 = arith.constant 0 : i32
    %c0_i32_0 = arith.constant 0 : i32
    return %1, %c0_i32 : i32, i32
  }
  func.func @transform_2(%arg0: i32, %arg1: i32) -> (i32, i32, i32) {
    %c0_i32 = arith.constant 0 : i32
    %c0_i32_0 = arith.constant 0 : i32
    %c0_i32_1 = arith.constant 0 : i32
    return %arg0, %c0_i32, %c0_i32_0 : i32, i32, i32
  }
}

</mosaic_0001>

<llo_original>
// kernel: tpu_custom_call.1
$region0: #{tpu_custom_call.1}
  #allocation0 [shape = 'u32[]', space=smem, size = 0x4, offset = 0x4, fixed_abs, tag = 'smem constant byte address 0x4 - core index']
  #allocation1 [shape = 'u32[144,128]{1,0:T(1,128)}', space=vmem, size = 0x12000, scoped, tag = 'internal scratch']
  #allocation2 [shape = 'f32[2,128]{1,0:T(2,128)}', space=vmem, size = 0x400, scoped, tag = 'scratch operand']
  %s0 = inlined_call_operand.hbm [shape: f32[16,128], index: 0, kind: input, shape index: {}]
  %s1 = inlined_call_operand.hbm [shape: f32[16,128], index: 1, kind: input, shape index: {}]
  %s2 = inlined_call_operand.hbm [shape: f32[1,2,128], index: 2, kind: output, shape index: {}]
  %s3 = sld [smem:[#allocation0]]
  $region34: #{tpu_custom_call.1} parent=0
    _
  %s5 = ssub.s32 1, %s3
  %s6 = scalar_select 0, %s5, %s3
  $region1: #{tpu_custom_call.1} parent=0
    #allocation3 [shape = 'u8[8192]{0}', space=vmem, size = 0x2000, scoped, tag = 'input window, operand 0, single buffered']
    #allocation4 [shape = 's32[1]{0}', space=sflag, size = 0x4, scoped, tag = 'scoped memory for tpu_custom_call.1']
    #allocation5 [shape = 's32[1]{0}', space=sflag, size = 0x4, scoped, tag = 'scoped memory for tpu_custom_call.1']
    #allocation6 [shape = 'u8[8192]{0}', space=vmem, size = 0x2000, scoped, tag = 'input window, operand 1, single buffered']
    #allocation7 [shape = 's32[1]{0}', space=sflag, size = 0x4, scoped, tag = 'scoped memory for tpu_custom_call.1']
    #allocation8 [shape = 'u8[1024]{0}', space=vmem, size = 0x400, scoped, tag = 'output window, operand 0, single buffered']
    %7 = vsyncpa [#allocation4], 0
    %8 = vsyncpa [#allocation7], 0
    %9 = vsyncpa [#allocation5], 0
    // Predicated region
    $region2: #{tpu_custom_call.1} parent=1 // pred_check
      _
    $region3: #{tpu_custom_call.1} parent=1 // pred_check_branch
      %11 = sbr.rel (0) target = $region5
    $region4: #{tpu_custom_call.1} parent=1 // pred_region
      %s12 = sadd.s32 0, 0
      %s13 = smul.u32 2, %s12
      %s15 = ssub.s32 256, 256
      %16 = vsyncadd [#allocation4], %s15
      %s17 = smul.addr %s13, 128
      %s18 = scalar_lea.hbm %s0, %s17
      %s19 = sshll.u32 [#allocation3], 4
      %s20 = int_to_ptr.vmem [resolvable:$true] %s19
      %25 = dma.hbm_to_vmem [thread:$0]  %s18, 256, %s20, [#allocation4], 128, 128, 8
    $region5: #{tpu_custom_call.1} parent=1 // pred_fallthru
      _
    // Predicated region
    $region6: #{tpu_custom_call.1} parent=1 // pred_check
      _
    $region7: #{tpu_custom_call.1} parent=1 // pred_check_branch
      %27 = sbr.rel (0) target = $region9
    $region8: #{tpu_custom_call.1} parent=1 // pred_region
      %s28 = sadd.s32 0, 0
      %s29 = smul.u32 2, %s28
      %s31 = ssub.s32 256, 256
      %32 = vsyncadd [#allocation7], %s31
      %s33 = smul.addr %s29, 128
      %s34 = scalar_lea.hbm %s1, %s33
      %s35 = sshll.u32 [#allocation6], 4
      %s36 = int_to_ptr.vmem [resolvable:$true] %s35
      %41 = dma.hbm_to_vmem [thread:$0]  %s34, 256, %s36, [#allocation7], 128, 128, 8
    $region9: #{tpu_custom_call.1} parent=1 // pred_fallthru
      _
    // Predicated region
    $region10: #{tpu_custom_call.1} parent=1 // pred_check
      _
    $region11: #{tpu_custom_call.1} parent=1 // pred_check_branch
      %43 = sbr.rel (0) target = $region13
    $region12: #{tpu_custom_call.1} parent=1 // pred_region
      %44 = dma.done [#allocation4], 256
    $region13: #{tpu_custom_call.1} parent=1 // pred_fallthru
      _
    // Predicated region
    $region14: #{tpu_custom_call.1} parent=1 // pred_check
      _
    $region15: #{tpu_custom_call.1} parent=1 // pred_check_branch
      %46 = sbr.rel (0) target = $region17
    $region16: #{tpu_custom_call.1} parent=1 // pred_region
      %47 = dma.done [#allocation7], 256
    $region17: #{tpu_custom_call.1} parent=1 // pred_fallthru
      _
    %s48 = sadd.s32 0, 0
    %s49 = smul.u32 2, %s48
    %s50 = sadd.s32 0, 0
    %s51 = smul.u32 2, %s50
    %p52 = scmp.eq.s32.totalorder 0, 0
    // Predicated region
    $region18: #{tpu_custom_call.1} parent=1 // pred_check
      %p53 = pneg %p52
    $region19: #{tpu_custom_call.1} parent=1 // pred_check_branch
      %55 = sbr.rel (%p53) target = $region21
    $region20: #{tpu_custom_call.1} parent=1 // pred_region
      %56 = vst [vmem:[#allocation2] sm:$0x3] 0.0
    $region21: #{tpu_custom_call.1} parent=1 // pred_fallthru
      _
    %v57 = vld [vmem:[#allocation3] sm:$0xff]
    %v58 = vld [vmem:[#allocation3 + $0x8] sm:$0xff]
    %v59 = vld [vmem:[#allocation6] sm:$0xff]
    %v60 = vld [vmem:[#allocation6 + $0x8] sm:$0xff]
    %v61 = vmul.f32 %v57, %v59
    %v62 = vmul.f32 %v58, %v60
    %v63 = vadd.f32 %v61, %v62
    %v64 = vrot.slane %v63, 4
    %v65 = vadd.f32 %v63, %v64
    %v66 = vrot.slane %v65, 2
    %v67 = vadd.f32 %v65, %v66
    %v68 = vrot.slane %v67, 1
    %v69 = vadd.f32 %v67, %v68
    %v70 = vadd.f32 %v57, %v59
    %v71 = vadd.f32 %v58, %v60
    %v72 = vadd.f32 %v70, %v71
    %v73 = vrot.slane %v72, 4
    %v74 = vadd.f32 %v72, %v73
    %v75 = vrot.slane %v74, 2
    %v76 = vadd.f32 %v74, %v75
    %v77 = vrot.slane %v76, 1
    %v78 = vadd.f32 %v76, %v77
    %vm79 = vcmask 1040384
    %v80 = vsel %vm79, %v69, %v78
    %v81 = vld [vmem:[#allocation2] sm:$0x3]
    %v82 = vadd.f32 %v81, %v80
    %83 = vst [vmem:[#allocation2] sm:$0x3] %v82
    // Predicated region
    $region22: #{tpu_custom_call.1} parent=1 // pred_check
      %p84 = pneg %p52
    $region23: #{tpu_custom_call.1} parent=1 // pred_check_branch
      %86 = sbr.rel (%p84) target = $region25
    $region24: #{tpu_custom_call.1} parent=1 // pred_region
      %v87 = vld [vmem:[#allocation2] sm:$0x3]
      %88 = vst [vmem:[#allocation8] sm:$0x3] %v87
    $region25: #{tpu_custom_call.1} parent=1 // pred_fallthru
      _
    // Predicated region
    $region26: #{tpu_custom_call.1} parent=1 // pred_check
      _
    $region27: #{tpu_custom_call.1} parent=1 // pred_check_branch
      %90 = sbr.rel (0) target = $region29
    $region28: #{tpu_custom_call.1} parent=1 // pred_region
      %s92 = ssub.s32 32, 32
      %93 = vsyncadd [#allocation5], %s92
      %s95 = sshll.u32 [#allocation8], 4
      %s96 = int_to_ptr.vmem [resolvable:$true] %s95
      %98 = dma.vmem_to_hbm [thread:$0]  %s96, 32, %s2, [#allocation5]
    $region29: #{tpu_custom_call.1} parent=1 // pred_fallthru
      _
    // Predicated region
    $region30: #{tpu_custom_call.1} parent=1 // pred_check
      _
    $region31: #{tpu_custom_call.1} parent=1 // pred_check_branch
      %100 = sbr.rel (0) target = $region33
    $region32: #{tpu_custom_call.1} parent=1 // pred_region
      %101 = dma.done [#allocation5], 32
    $region33: #{tpu_custom_call.1} parent=1 // pred_fallthru
      _
    %102 = vsyncpa [#allocation4], 1
    %103 = vsyncpa [#allocation7], 1
    %104 = vsyncpa [#allocation5], 1

</llo_original>
